<compile_context>
chip_gen: v6e
topology: v6e:2x2x1
jax: 0.10.0
libtpu: 0.0.40
codegen_flags: <defaults>
</compile_context>

<pallas_src>
import jax
import jax.numpy as jnp
from jax.experimental import pallas as pl
from jax.experimental.pallas import tpu as pltpu

M_TRAIN = 20   # number of GP training points (np.linspace(-1, 1, 20))
M_SUB = 32     # training axis padded to a multiple of 8 sublanes
TILE_N = 512   # lane tile for large test batches (multiple of 128)


def gp_mean_kernel(params_ref, xtest_ref, xtrain_ref, alpha_ref, out_ref):
    # params_ref (SMEM): [mean_const, gamma]  with gamma = -0.5 / lengthscale^2
    c = params_ref[0]
    gamma = params_ref[1]

    xt = xtest_ref[...]                       # (1, TILE)   test pts on lanes
    xr = xtrain_ref[...]                      # (M_SUB, 1)  train pts on sublanes

    d = xr - xt                               # (M_SUB, TILE) broadcast, VPU
    k = jnp.exp(gamma * d * d)                # scaled RBF cross-cov, EUP exp

    # posterior mean: sum_m alpha'[m] * k[m, :] + c
    # alpha' = outputscale * alpha, zero in padded rows -> padding is a no-op.
    # VPU mul + XLU cross-sublane reduce; output is a lane-dense (1, TILE) row.
    out_ref[...] = jnp.sum(alpha_ref[...] * k, axis=0, keepdims=True) + c


def gp_nn_forward(x_test, params, x_train_col, alpha_col):
    """x_test: (N,) or (N, 1) float32 test locations -> (1, N) predictive mean."""
    x_flat = x_test.reshape(-1).astype(jnp.float32)
    n = x_flat.shape[0]

    # pad the test axis to a lane-dense width
    n_pad = max(128, ((n + 127) // 128) * 128)
    tile_n = n_pad if n_pad <= TILE_N else TILE_N
    n_pad = ((n_pad + tile_n - 1) // tile_n) * tile_n
    x_row = jnp.zeros((1, n_pad), jnp.float32).at[0, :n].set(x_flat)

    grid = (n_pad // tile_n,)   # == (1,) for small N -> effectively gridless
    out = pl.pallas_call(
        gp_mean_kernel,
        out_shape=jax.ShapeDtypeStruct((1, n_pad), jnp.float32),
        grid=grid,
        in_specs=[
            pl.BlockSpec(memory_space=pltpu.MemorySpace.SMEM),      # params (2,)
            pl.BlockSpec((1, tile_n), lambda i: (0, i)),            # x_test (1, n_pad)
            pl.BlockSpec((M_SUB, 1), lambda i: (0, 0)),             # x_train (M_SUB, 1)
            pl.BlockSpec((M_SUB, 1), lambda i: (0, 0)),             # alpha' (M_SUB, 1)
        ],
        out_specs=pl.BlockSpec((1, tile_n), lambda i: (0, i)),
        compiler_params=pltpu.CompilerParams(
            dimension_semantics=("parallel",)),                     # v7x: 2 TCs at scale
    )(params, x_row, x_train_col, alpha_col)

    # gpytorch batch_shape=[1] => MultivariateNormal mean has shape (1, N)
    return out[:, :n]


def build_gp_state():
    """Deterministic synthetic 'trained' GP state (no checkpoint load)."""
    # TODO(synk): hyperparameters are fixed plausible values, not produced by
    # running the gpytorch Adam training loop (no gpytorch in JAX).
    mean_const = jnp.float32(0.65)
    outputscale = jnp.float32(0.3)
    lengthscale = jnp.float32(2.0)
    noise = jnp.float32(0.04)

    # training data as in train_gp() (np.random.random is uniform -> uniform here)
    train_x = (jnp.linspace(-1.0, 1.0, M_TRAIN) * (2.0 * jnp.pi)).astype(jnp.float32)
    eps = jax.random.uniform(jax.random.PRNGKey(0), (M_TRAIN,),
                             dtype=jnp.float32) * jnp.sqrt(jnp.float32(0.04))
    train_y = (1.0 + jnp.cos(train_x) + eps) / 4.0 + 0.4

    # alpha = (K_XX + noise I)^{-1} (y - c)  -- tiny 20x20 solve, plain JAX glue
    d = (train_x[:, None] - train_x[None, :]) / lengthscale
    K = outputscale * jnp.exp(-0.5 * d * d) + noise * jnp.eye(M_TRAIN, dtype=jnp.float32)
    alpha = jnp.linalg.solve(K, train_y - mean_const)              # (M_TRAIN,)

    # fold constants: alpha' = outputscale * alpha ; gamma = -0.5 / l^2
    alpha_scaled = outputscale * alpha
    gamma = jnp.float32(-0.5) / (lengthscale * lengthscale)

    x_train_col = jnp.zeros((M_SUB, 1), jnp.float32).at[:M_TRAIN, 0].set(train_x)
    alpha_col = jnp.zeros((M_SUB, 1), jnp.float32).at[:M_TRAIN, 0].set(alpha_scaled)
    params = jnp.stack([mean_const, gamma]).astype(jnp.float32)
    return params, x_train_col, alpha_col, (train_x, alpha, mean_const,
                                            outputscale, lengthscale)


def reference_mean(x_test, train_x, alpha, c, outputscale, lengthscale):
    x_flat = x_test.reshape(-1, 1)
    d = (x_flat - train_x[None, :]) / lengthscale                  # (N, M_TRAIN)
    k = outputscale * jnp.exp(-0.5 * d * d)
    return (k @ alpha + c).reshape(1, -1)


if __name__ == "__main__":
    params, x_train_col, alpha_col, ref_state = build_gp_state()

    # small test input: 8 query points in (-pi, pi), shape (8, 1) like train_x
    key = jax.random.PRNGKey(0)
    x_test = (jax.random.uniform(key, (8, 1), dtype=jnp.float32) * 2.0 - 1.0) * jnp.pi

    out = gp_nn_forward(x_test, params, x_train_col, alpha_col)
    out = jax.block_until_ready(out)

    # sanity check against pure-JAX reference of the same math
    train_x, alpha, c, s, l = ref_state
    ref = reference_mean(x_test, train_x, alpha, c, s, l)
    assert out.shape == (1, 8), out.shape
    assert jnp.allclose(out, ref, atol=1e-5, rtol=1e-5), (out, ref)

    print("KERNEL_OK")
</pallas_src>

<mosaic_0001>
module attributes {stable_mosaic.version = 11 : i64} {
  func.func @gp_mean_kernel(%arg0: i32, %arg1: memref<2xf32, #tpu.memory_space<smem>>, %arg2: memref<1x128xf32, #tpu.memory_space<vmem>>, %arg3: memref<32x1xf32, #tpu.memory_space<vmem>>, %arg4: memref<32x1xf32, #tpu.memory_space<vmem>>, %arg5: memref<1x128xf32, #tpu.memory_space<vmem>>) attributes {dimension_semantics = [#tpu.dimension_semantics<parallel>], iteration_bounds = array<i64: 1>, scalar_prefetch = 0 : i64, scratch_operands = 0 : i64, tpu.core_type = #tpu.core_type<tc>, window_params = [{transform_indices = @transform_0, window_bounds = array<i64: 2>}, {transform_indices = @transform_1, window_bounds = array<i64: 1, 128>}, {pipeline_mode = #tpu.pipeline_mode<synchronous>, transform_indices = @transform_2, window_bounds = array<i64: 32, 1>}, {pipeline_mode = #tpu.pipeline_mode<synchronous>, transform_indices = @transform_3, window_bounds = array<i64: 32, 1>}, {transform_indices = @transform_4, window_bounds = array<i64: 1, 128>}]} {
    %c0 = arith.constant 0 : index
    %0 = memref.load %arg1[%c0] : memref<2xf32, #tpu.memory_space<smem>>
    %c1 = arith.constant 1 : index
    %1 = memref.load %arg1[%c1] : memref<2xf32, #tpu.memory_space<smem>>
    %c0_0 = arith.constant 0 : index
    %c0_1 = arith.constant 0 : index
    %2 = vector.load %arg2[%c0_0, %c0_1] : memref<1x128xf32, #tpu.memory_space<vmem>>, vector<1x128xf32>
    %c0_2 = arith.constant 0 : index
    %c0_3 = arith.constant 0 : index
    %3 = vector.load %arg3[%c0_2, %c0_3] : memref<32x1xf32, #tpu.memory_space<vmem>>, vector<32x1xf32>
    %4 = vector.broadcast %3 : vector<32x1xf32> to vector<32x128xf32>
    %5 = vector.broadcast %2 : vector<1x128xf32> to vector<32x128xf32>
    %6 = arith.subf %4, %5 : vector<32x128xf32>
    %7 = vector.broadcast %1 : f32 to vector<32x128xf32>
    %8 = arith.mulf %7, %6 : vector<32x128xf32>
    %9 = arith.mulf %8, %6 : vector<32x128xf32>
    %10 = math.exp %9 : vector<32x128xf32>
    %c0_4 = arith.constant 0 : index
    %c0_5 = arith.constant 0 : index
    %11 = vector.load %arg4[%c0_4, %c0_5] : memref<32x1xf32, #tpu.memory_space<vmem>>, vector<32x1xf32>
    %12 = vector.broadcast %11 : vector<32x1xf32> to vector<32x128xf32>
    %13 = arith.mulf %12, %10 : vector<32x128xf32>
    %cst = arith.constant dense<0.000000e+00> : vector<128xf32>
    %14 = vector.multi_reduction <add>, %13, %cst [0] : vector<32x128xf32> to vector<128xf32>
    %15 = vector.shape_cast %14 : vector<128xf32> to vector<1x128xf32>
    %16 = vector.broadcast %0 : f32 to vector<1x128xf32>
    %17 = arith.addf %15, %16 : vector<1x128xf32>
    %c0_6 = arith.constant 0 : index
    %c0_7 = arith.constant 0 : index
    %18 = vector.load %arg5[%c0_6, %c0_7] : memref<1x128xf32, #tpu.memory_space<vmem>>, vector<1x128xf32>
    tpu.vector_store %arg5[%c0_6, %c0_7], %17 {strides = array<i32>} : memref<1x128xf32, #tpu.memory_space<vmem>>, vector<1x128xf32>,
    return
  }
  func.func @transform_0(%arg0: i32) -> i32 {
    %c0_i32 = arith.constant 0 : i32
    %c0_i32_0 = arith.constant 0 : i32
    return %c0_i32 : i32
  }
  func.func @transform_1(%arg0: i32) -> (i32, i32) {
    %c0_i32 = arith.constant 0 : i32
    %c0_i32_0 = arith.constant 0 : i32
    return %c0_i32, %arg0 : i32, i32
  }
  func.func @transform_2(%arg0: i32) -> (i32, i32) {
    %c0_i32 = arith.constant 0 : i32
    %c0_i32_0 = arith.constant 0 : i32
    %c0_i32_1 = arith.constant 0 : i32
    return %c0_i32, %c0_i32_0 : i32, i32
  }
  func.func @transform_3(%arg0: i32) -> (i32, i32) {
    %c0_i32 = arith.constant 0 : i32
    %c0_i32_0 = arith.constant 0 : i32
    %c0_i32_1 = arith.constant 0 : i32
    return %c0_i32, %c0_i32_0 : i32, i32
  }
  func.func @transform_4(%arg0: i32) -> (i32, i32) {
    %c0_i32 = arith.constant 0 : i32
    %c0_i32_0 = arith.constant 0 : i32
    return %c0_i32, %arg0 : i32, i32
  }
}

</mosaic_0001>

<llo_original>
// kernel: tpu_custom_call.1
$region0: #{tpu_custom_call.1}
  #allocation0 [shape = 'u32[]', space=smem, size = 0x4, offset = 0x4, fixed_abs, tag = 'smem constant byte address 0x4 - core index']
  #allocation1 [shape = 'u32[144,128]{1,0:T(1,128)}', space=vmem, size = 0x12000, scoped, tag = 'internal scratch']
  %s0 = inlined_call_operand.vmem [shape: f32[2], index: 0, kind: input, shape index: {}]
  %s1 = inlined_call_operand.vmem [shape: f32[1,128], index: 1, kind: input, shape index: {}]
  %s2 = inlined_call_operand.vmem [shape: f32[32,1], index: 2, kind: input, shape index: {}]
  %s3 = inlined_call_operand.vmem [shape: f32[32,1], index: 3, kind: input, shape index: {}]
  %s4 = inlined_call_operand.hbm [shape: f32[1,128], index: 4, kind: output, shape index: {}]
  %s5 = sld [smem:[#allocation0]]
  $region30: #{tpu_custom_call.1} parent=0
    _
  %s7 = ssub.s32 1, %s5
  %s8 = scalar_select 0, %s7, %s5
  $region1: #{tpu_custom_call.1} parent=0
    #allocation2 [shape = 'u8[512]{0}', space=smem, size = 0x200, scoped, tag = 'input window, operand 0, single buffered']
    #allocation3 [shape = 's32[1]{0}', space=sflag, size = 0x4, scoped, tag = 'scoped memory for tpu_custom_call.1']
    #allocation4 [shape = 's32[1]{0}', space=sflag, size = 0x4, scoped, tag = 'scoped memory for tpu_custom_call.1']
    #allocation5 [shape = 'u8[512]{0}', space=vmem, size = 0x400, scoped, tag = 'output window, operand 0, single buffered']
    %9 = vsyncpa [#allocation4], 0
    %10 = vsyncpa [#allocation3], 0
    // Predicated region
    $region2: #{tpu_custom_call.1} parent=1 // pred_check
      _
    $region3: #{tpu_custom_call.1} parent=1 // pred_check_branch
      %12 = sbr.rel (0) target = $region5
    $region4: #{tpu_custom_call.1} parent=1 // pred_region
      %s14 = ssub.s32 16, 16
      %15 = vsyncadd [#allocation4], %s14
      %s17 = sshll.u32 %s0, 4
      %s18 = int_to_ptr.vmem [resolvable:$true] %s17
      %20 = dma.vmem_to_smem %s18, 16, [#allocation2], [#allocation4]
    $region5: #{tpu_custom_call.1} parent=1 // pred_fallthru
      _
    // Predicated region
    $region6: #{tpu_custom_call.1} parent=1 // pred_check
      _
    $region7: #{tpu_custom_call.1} parent=1 // pred_check_branch
      %22 = sbr.rel (0) target = $region9
    $region8: #{tpu_custom_call.1} parent=1 // pred_region
      _
    $region9: #{tpu_custom_call.1} parent=1 // pred_fallthru
      _
    // Predicated region
    $region10: #{tpu_custom_call.1} parent=1 // pred_check
      _
    $region11: #{tpu_custom_call.1} parent=1 // pred_check_branch
      %24 = sbr.rel (0) target = $region13
    $region12: #{tpu_custom_call.1} parent=1 // pred_region
      _
    $region13: #{tpu_custom_call.1} parent=1 // pred_fallthru
      _
    // Predicated region
    $region14: #{tpu_custom_call.1} parent=1 // pred_check
      _
    $region15: #{tpu_custom_call.1} parent=1 // pred_check_branch
      %26 = sbr.rel (0) target = $region17
    $region16: #{tpu_custom_call.1} parent=1 // pred_region
      _
    $region17: #{tpu_custom_call.1} parent=1 // pred_fallthru
      _
    // Predicated region
    $region18: #{tpu_custom_call.1} parent=1 // pred_check
      _
    $region19: #{tpu_custom_call.1} parent=1 // pred_check_branch
      %28 = sbr.rel (0) target = $region21
    $region20: #{tpu_custom_call.1} parent=1 // pred_region
      %29 = dma.done [#allocation4], 16
    $region21: #{tpu_custom_call.1} parent=1 // pred_fallthru
      _
    %30 = sfence
    %s31 = sld [smem:[#allocation2]]
    %s32 = sld [smem:[#allocation2 + $0x1]]
    %v33 = vld [vmem:[%s1] sm:$0x1]
    %v34 = vld [vmem:[%s2] sm:$0xff]
    %v35 = vld [vmem:[%s2 + $0x8] sm:$0xff]
    %v36 = vld [vmem:[%s2 + $0x10] sm:$0xff]
    %v37 = vld [vmem:[%s2 + $0x18] sm:$0xff]
    %39 = vset.pattern.permute.xlu0 0
    %40 = vperm.xlu0 %39, %v34
    %v41 = vpop.permute.xlu0 %40
    %44 = vset.pattern.permute.xlu0 0
    %45 = vperm.xlu0 %44, %v35
    %v46 = vpop.permute.xlu0 %45
    %49 = vset.pattern.permute.xlu0 0
    %50 = vperm.xlu0 %49, %v36
    %v51 = vpop.permute.xlu0 %50
    %54 = vset.pattern.permute.xlu0 0
    %55 = vperm.xlu0 %54, %v37
    %v56 = vpop.permute.xlu0 %55
    %v59 = vlaneseq
    %v60 = vshrl.u32 %v59, 7
    %v61 = vsub.s32 0, %v60
    %v62 = vrot.slane %v33, %v61
    %v64 = vsub.f32 %v41, %v62
    %v65 = vsub.f32 %v46, %v62
    %v66 = vsub.f32 %v51, %v62
    %v67 = vsub.f32 %v56, %v62
    %v68 = vstv %s32
    %v69 = vmul.f32 %v68, %v64
    %v70 = vmul.f32 %v68, %v65
    %v71 = vmul.f32 %v68, %v66
    %v72 = vmul.f32 %v68, %v67
    %v73 = vmul.f32 %v69, %v64
    %v74 = vmul.f32 %v70, %v65
    %v75 = vmul.f32 %v71, %v66
    %v76 = vmul.f32 %v72, %v67
    %v77 = vmul.f32 %v73, 1.442695
    %v78 = vpow.pop %v77
    %v79 = vmul.f32 %v74, 1.442695
    %v80 = vpow.pop %v79
    %v81 = vmul.f32 %v75, 1.442695
    %v82 = vpow.pop %v81
    %v83 = vmul.f32 %v76, 1.442695
    %v84 = vpow.pop %v83
    %v85 = vld [vmem:[%s3] sm:$0xff]
    %v86 = vld [vmem:[%s3 + $0x8] sm:$0xff]
    %v87 = vld [vmem:[%s3 + $0x10] sm:$0xff]
    %v88 = vld [vmem:[%s3 + $0x18] sm:$0xff]
    %90 = vset.pattern.permute.xlu0 0
    %91 = vperm.xlu0 %90, %v85
    %v92 = vpop.permute.xlu0 %91
    %95 = vset.pattern.permute.xlu0 0
    %96 = vperm.xlu0 %95, %v86
    %v97 = vpop.permute.xlu0 %96
    %100 = vset.pattern.permute.xlu0 0
    %101 = vperm.xlu0 %100, %v87
    %v102 = vpop.permute.xlu0 %101
    %105 = vset.pattern.permute.xlu0 0
    %106 = vperm.xlu0 %105, %v88
    %v107 = vpop.permute.xlu0 %106
    %v109 = vmul.f32 %v92, %v78
    %v110 = vmul.f32 %v97, %v80
    %v111 = vmul.f32 %v102, %v82
    %v112 = vmul.f32 %v107, %v84
    %v113 = vadd.f32 %v109, %v110
    %v114 = vadd.f32 %v113, %v111
    %v115 = vadd.f32 %v114, %v112
    %v116 = vrot.slane %v115, 4
    %v117 = vadd.f32 %v115, %v116
    %v118 = vrot.slane %v117, 2
    %v119 = vadd.f32 %v117, %v118
    %v120 = vrot.slane %v119, 1
    %v121 = vadd.f32 %v119, %v120
    %v122 = vstv %s31
    %v123 = vadd.f32 %v121, %v122
    %124 = vst [vmem:[#allocation5] sm:$0x1] %v123
    // Predicated region
    $region22: #{tpu_custom_call.1} parent=1 // pred_check
      _
    $region23: #{tpu_custom_call.1} parent=1 // pred_check_branch
      %126 = sbr.rel (0) target = $region25
    $region24: #{tpu_custom_call.1} parent=1 // pred_region
      %s128 = ssub.s32 16, 16
      %129 = vsyncadd [#allocation3], %s128
      %s131 = sshll.u32 [#allocation5], 4
      %s132 = int_to_ptr.vmem [resolvable:$true] %s131
      %134 = dma.vmem_to_hbm [thread:$0]  %s132, 16, %s4, [#allocation3]
    $region25: #{tpu_custom_call.1} parent=1 // pred_fallthru
      _
    // Predicated region
    $region26: #{tpu_custom_call.1} parent=1 // pred_check
      _
    $region27: #{tpu_custom_call.1} parent=1 // pred_check_branch
      %136 = sbr.rel (0) target = $region29
    $region28: #{tpu_custom_call.1} parent=1 // pred_region
      %137 = dma.done [#allocation3], 16
    $region29: #{tpu_custom_call.1} parent=1 // pred_fallthru
      _
    %138 = vsyncpa [#allocation3], 1
    %139 = vsyncpa [#allocation4], 1

</llo_original>
